<compile_context>
chip_gen: v7x
topology: tpu7x:2x2x1
jax: 0.10.0
libtpu: 0.0.40
codegen_flags: <defaults>
</compile_context>

<pallas_src>
import functools

import jax
import jax.numpy as jnp
from jax.experimental import pallas as pl
from jax.experimental.pallas import tpu as pltpu


def _round_up(x, m):
    return ((x + m - 1) // m) * m


def forward_model_kernel(action_ref, feat_ref, wa_ref, wf_ref, b_ref, out_ref):
    # out = action @ W_a + features @ W_f + b   (f32 accumulation on the MXU)
    acc = jnp.dot(action_ref[...], wa_ref[...], preferred_element_type=jnp.float32)
    acc += jnp.dot(feat_ref[...], wf_ref[...], preferred_element_type=jnp.float32)
    out_ref[...] = (acc + b_ref[...]).astype(out_ref.dtype)


def prepare_forward_model_params(weight, bias, n_actions):
    """One-time parameter prep (hoisted off the hot path).

    weight: [hidden, hidden + n_actions] (PyTorch nn.Linear layout)
    bias:   [hidden]
    Returns (W_a, W_f, b2d) with
      W_a: [n_actions, hidden]  (action-facing half, pre-transposed)
      W_f: [hidden,   hidden]   (feature-facing half, pre-transposed)
      b2d: [1, hidden]          (2-D so it lands lane-major in VMEM)
    """
    hidden = weight.shape[0]
    w_a = jnp.asarray(weight[:, :n_actions]).T
    w_f = jnp.asarray(weight[:, n_actions:]).T
    b2d = jnp.asarray(bias).reshape(1, hidden)
    return w_a, w_f, b2d


def _pick_batch_tile(B, block_b):
    """Balanced batch tile.

    Single block for B <= block_b (block equal to the full dim is always
    legal).  Otherwise choose an even number of steps (v7x: 2 TCs stay
    balanced) and split the batch evenly, rounded up to 8 sublanes so the
    (8,128) block rule holds for any caller-supplied block_b.
    """
    if B <= block_b:
        return B
    steps = pl.cdiv(B, block_b)
    if steps % 2:
        steps += 1  # even step count -> balanced megacore sharding on v7x
    return _round_up(pl.cdiv(B, steps), 8)


@functools.partial(jax.jit, static_argnames=("block_b",))
def forward_model(action, features, w_a, w_f, b2d, *, block_b=4096):
    """action: [B, n_actions], features: [B, hidden] (row-major [batch, feature]).
    w_a/w_f/b2d come from prepare_forward_model_params (done once)."""
    B, n_actions = action.shape
    hidden = features.shape[1]
    itemsize = jnp.dtype(features.dtype).itemsize

    tb = _pick_batch_tile(B, block_b)
    grid = (pl.cdiv(B, tb),)

    cost = pl.CostEstimate(
        flops=2 * B * (n_actions + hidden) * hidden,
        transcendentals=0,
        bytes_accessed=(B * (n_actions + 2 * hidden)
                        + w_a.size + w_f.size + hidden) * itemsize,
    )

    return pl.pallas_call(
        forward_model_kernel,
        out_shape=jax.ShapeDtypeStruct((B, hidden), features.dtype),
        grid_spec=pltpu.PrefetchScalarGridSpec(
            num_scalar_prefetch=0,
            grid=grid,
            in_specs=[
                pl.BlockSpec((tb, n_actions), lambda i: (i, 0)),      # action tile
                pl.BlockSpec((tb, hidden), lambda i: (i, 0)),         # feature tile
                pl.BlockSpec((n_actions, hidden), lambda i: (0, 0)),  # W_a resident
                pl.BlockSpec((hidden, hidden), lambda i: (0, 0)),     # W_f resident
                pl.BlockSpec((1, hidden), lambda i: (0, 0)),          # bias resident
            ],
            out_specs=pl.BlockSpec((tb, hidden), lambda i: (i, 0)),
        ),
        compiler_params=pltpu.CompilerParams(
            dimension_semantics=("parallel",),  # shard batch across TCs on v7x
        ),
        cost_estimate=cost,
    )(action, features, w_a, w_f, b2d)


def _reference(action, features, weight, bias):
    return jnp.concatenate([action, features], axis=-1) @ weight.T + bias


if __name__ == "__main__":
    # Small shapes consistent with the module.
    batch = 8
    n_actions = 4
    hidden_dims = 32
    in_dim = hidden_dims + n_actions

    key = jax.random.PRNGKey(0)
    k_act, k_feat, k_w, k_b, k_act2, k_feat2 = jax.random.split(key, 6)

    # action is typically a one-hot over n_actions (module keeps torch.eye(n_actions)).
    action_ids = jax.random.randint(k_act, (batch,), 0, n_actions)
    action = jax.nn.one_hot(action_ids, n_actions, dtype=jnp.float32)
    features = jax.random.normal(k_feat, (batch, hidden_dims), dtype=jnp.float32)

    # Deterministic nn.Linear-style init: U(-1/sqrt(fan_in), 1/sqrt(fan_in)).
    bound = 1.0 / jnp.sqrt(jnp.float32(in_dim))
    weight = jax.random.uniform(
        k_w, (hidden_dims, in_dim), minval=-bound, maxval=bound, dtype=jnp.float32
    )
    bias = jax.random.uniform(
        k_b, (hidden_dims,), minval=-bound, maxval=bound, dtype=jnp.float32
    )

    # One-time parameter prep (transpose/split/reshape hoisted out of hot path).
    w_a, w_f, b2d = prepare_forward_model_params(weight, bias, n_actions)

    # --- small-batch test (single block, block == full batch dim) ---
    out = forward_model(action, features, w_a, w_f, b2d)
    jax.block_until_ready(out)
    ref = _reference(action, features, weight, bias)
    assert out.shape == (batch, hidden_dims)
    assert jnp.allclose(out, ref, atol=1e-5, rtol=1e-5)

    # --- larger, non-multiple-of-tile batch; small block_b forces a multi-step
    #     pipelined grid with balanced (even) step count and a partial block ---
    big_b = 1040
    big_ids = jax.random.randint(k_act2, (big_b,), 0, n_actions)
    big_action = jax.nn.one_hot(big_ids, n_actions, dtype=jnp.float32)
    big_features = jax.random.normal(k_feat2, (big_b, hidden_dims), dtype=jnp.float32)
    big_out = forward_model(big_action, big_features, w_a, w_f, b2d, block_b=256)
    jax.block_until_ready(big_out)
    big_ref = _reference(big_action, big_features, weight, bias)
    assert big_out.shape == (big_b, hidden_dims)
    assert jnp.allclose(big_out, big_ref, atol=1e-5, rtol=1e-5)

    # --- default (large) block_b on the same batch: single block path ---
    big_out2 = forward_model(big_action, big_features, w_a, w_f, b2d)
    jax.block_until_ready(big_out2)
    assert jnp.allclose(big_out2, big_ref, atol=1e-5, rtol=1e-5)

    print("KERNEL_OK")
</pallas_src>

<mosaic_0001>
module attributes {stable_mosaic.version = 11 : i64} {
  func.func @forward_model_kernel(%arg0: i32, %arg1: memref<8x4xf32, #tpu.memory_space<vmem>>, %arg2: memref<8x32xf32, #tpu.memory_space<vmem>>, %arg3: memref<4x32xf32, #tpu.memory_space<vmem>>, %arg4: memref<32x32xf32, #tpu.memory_space<vmem>>, %arg5: memref<1x32xf32, #tpu.memory_space<vmem>>, %arg6: memref<8x32xf32, #tpu.memory_space<vmem>>) attributes {dimension_semantics = [#tpu.dimension_semantics<parallel>], iteration_bounds = array<i64: 1>, scalar_prefetch = 0 : i64, scratch_operands = 0 : i64, tpu.core_type = #tpu.core_type<tc>, window_params = [{transform_indices = @transform_0, window_bounds = array<i64: 8, 4>}, {transform_indices = @transform_1, window_bounds = array<i64: 8, 32>}, {pipeline_mode = #tpu.pipeline_mode<synchronous>, transform_indices = @transform_2, window_bounds = array<i64: 4, 32>}, {pipeline_mode = #tpu.pipeline_mode<synchronous>, transform_indices = @transform_3, window_bounds = array<i64: 32, 32>}, {pipeline_mode = #tpu.pipeline_mode<synchronous>, transform_indices = @transform_4, window_bounds = array<i64: 1, 32>}, {transform_indices = @transform_5, window_bounds = array<i64: 8, 32>}]} {
    %c0 = arith.constant 0 : index
    %c0_0 = arith.constant 0 : index
    %0 = vector.load %arg1[%c0, %c0_0] : memref<8x4xf32, #tpu.memory_space<vmem>>, vector<8x4xf32>
    %c0_1 = arith.constant 0 : index
    %c0_2 = arith.constant 0 : index
    %1 = vector.load %arg3[%c0_1, %c0_2] : memref<4x32xf32, #tpu.memory_space<vmem>>, vector<4x32xf32>
    %cst = arith.constant dense<0.000000e+00> : vector<8x32xf32>
    %2 = tpu.matmul %0, %1, %cst {dimension_numbers = #tpu.dot_dimension_numbers<[1], [0], [0], [1], [0, 0, 1, 1], [], []>} : vector<8x4xf32>, vector<4x32xf32>, vector<8x32xf32> -> vector<8x32xf32>
    %c0_3 = arith.constant 0 : index
    %c0_4 = arith.constant 0 : index
    %3 = vector.load %arg2[%c0_3, %c0_4] : memref<8x32xf32, #tpu.memory_space<vmem>>, vector<8x32xf32>
    %c0_5 = arith.constant 0 : index
    %c0_6 = arith.constant 0 : index
    %4 = vector.load %arg4[%c0_5, %c0_6] : memref<32x32xf32, #tpu.memory_space<vmem>>, vector<32x32xf32>
    %cst_7 = arith.constant dense<0.000000e+00> : vector<8x32xf32>
    %5 = tpu.matmul %3, %4, %cst_7 {dimension_numbers = #tpu.dot_dimension_numbers<[1], [0], [0], [1], [0, 0, 1, 1], [], []>} : vector<8x32xf32>, vector<32x32xf32>, vector<8x32xf32> -> vector<8x32xf32>
    %6 = arith.addf %2, %5 : vector<8x32xf32>
    %c0_8 = arith.constant 0 : index
    %c0_9 = arith.constant 0 : index
    %7 = vector.load %arg5[%c0_8, %c0_9] : memref<1x32xf32, #tpu.memory_space<vmem>>, vector<1x32xf32>
    %8 = vector.broadcast %7 : vector<1x32xf32> to vector<8x32xf32>
    %9 = arith.addf %6, %8 : vector<8x32xf32>
    %c0_10 = arith.constant 0 : index
    %c0_11 = arith.constant 0 : index
    %10 = vector.load %arg6[%c0_10, %c0_11] : memref<8x32xf32, #tpu.memory_space<vmem>>, vector<8x32xf32>
    tpu.vector_store %arg6[%c0_10, %c0_11], %9 {strides = array<i32>} : memref<8x32xf32, #tpu.memory_space<vmem>>, vector<8x32xf32>,
    return
  }
  func.func @transform_0(%arg0: i32) -> (i32, i32) {
    %c0_i32 = arith.constant 0 : i32
    %c0_i32_0 = arith.constant 0 : i32
    return %arg0, %c0_i32 : i32, i32
  }
  func.func @transform_1(%arg0: i32) -> (i32, i32) {
    %c0_i32 = arith.constant 0 : i32
    %c0_i32_0 = arith.constant 0 : i32
    return %arg0, %c0_i32 : i32, i32
  }
  func.func @transform_2(%arg0: i32) -> (i32, i32) {
    %c0_i32 = arith.constant 0 : i32
    %c0_i32_0 = arith.constant 0 : i32
    %c0_i32_1 = arith.constant 0 : i32
    return %c0_i32, %c0_i32_0 : i32, i32
  }
  func.func @transform_3(%arg0: i32) -> (i32, i32) {
    %c0_i32 = arith.constant 0 : i32
    %c0_i32_0 = arith.constant 0 : i32
    %c0_i32_1 = arith.constant 0 : i32
    return %c0_i32, %c0_i32_0 : i32, i32
  }
  func.func @transform_4(%arg0: i32) -> (i32, i32) {
    %c0_i32 = arith.constant 0 : i32
    %c0_i32_0 = arith.constant 0 : i32
    %c0_i32_1 = arith.constant 0 : i32
    return %c0_i32, %c0_i32_0 : i32, i32
  }
  func.func @transform_5(%arg0: i32) -> (i32, i32) {
    %c0_i32 = arith.constant 0 : i32
    %c0_i32_0 = arith.constant 0 : i32
    return %arg0, %c0_i32 : i32, i32
  }
}

</mosaic_0001>

<llo_original>
// kernel: forward_model.1
$region0: #{forward_model.1}
  #allocation0 [shape = 'u32[]', space=smem, size = 0x4, offset = 0x4, fixed_abs, tag = 'smem constant byte address 0x4 - core index']
  #allocation1 [shape = 'u32[144,128]{1,0:T(1,128)}', space=vmem, size = 0x12000, scoped, tag = 'internal scratch']
  %s0 = inlined_call_operand.vmem [shape: f32[8,4], index: 0, kind: input, shape index: {}]
  %s1 = inlined_call_operand.vmem [shape: f32[8,32], index: 1, kind: input, shape index: {}]
  %s2 = inlined_call_operand.vmem [shape: f32[4,32], index: 2, kind: input, shape index: {}]
  %s3 = inlined_call_operand.hbm [shape: f32[32,32], index: 3, kind: input, shape index: {}]
  %s4 = inlined_call_operand.vmem [shape: f32[1,32], index: 4, kind: input, shape index: {}]
  %s5 = inlined_call_operand.hbm [shape: f32[8,32], index: 5, kind: output, shape index: {}]
  %s6 = sld [smem:[#allocation0]]
  $region34: #{forward_model.1} parent=0
    _
  %s8 = ssub.s32 1, %s6
  %s9 = scalar_select 0, %s8, %s6
  $region1: #{forward_model.1} parent=0
    #allocation2 [shape = 'u8[16384]{0}', space=vmem, size = 0x4000, scoped, tag = 'input window, operand 3, single buffered']
    #allocation3 [shape = 's32[1]{0}', space=sflag, size = 0x4, scoped, tag = 'scoped memory for forward_model.1']
    #allocation4 [shape = 's32[1]{0}', space=sflag, size = 0x4, scoped, tag = 'scoped memory for forward_model.1']
    #allocation5 [shape = 'u8[4096]{0}', space=vmem, size = 0x1000, scoped, tag = 'output window, operand 0, single buffered']
    %10 = vsyncpa [#allocation3], 0
    %11 = vsyncpa [#allocation4], 0
    // Predicated region
    $region2: #{forward_model.1} parent=1 // pred_check
      _
    $region3: #{forward_model.1} parent=1 // pred_check_branch
      %13 = sbr.rel (0) target = $region5
    $region4: #{forward_model.1} parent=1 // pred_region
      _
    $region5: #{forward_model.1} parent=1 // pred_fallthru
      _
    // Predicated region
    $region6: #{forward_model.1} parent=1 // pred_check
      _
    $region7: #{forward_model.1} parent=1 // pred_check_branch
      %15 = sbr.rel (0) target = $region9
    $region8: #{forward_model.1} parent=1 // pred_region
      _
    $region9: #{forward_model.1} parent=1 // pred_fallthru
      _
    // Predicated region
    $region10: #{forward_model.1} parent=1 // pred_check
      _
    $region11: #{forward_model.1} parent=1 // pred_check_branch
      %17 = sbr.rel (0) target = $region13
    $region12: #{forward_model.1} parent=1 // pred_region
      _
    $region13: #{forward_model.1} parent=1 // pred_fallthru
      _
    // Predicated region
    $region14: #{forward_model.1} parent=1 // pred_check
      _
    $region15: #{forward_model.1} parent=1 // pred_check_branch
      %19 = sbr.rel (0) target = $region17
    $region16: #{forward_model.1} parent=1 // pred_region
      %s21 = ssub.s32 512, 512
      %22 = vsyncadd [#allocation3], %s21
      %s23 = sshll.u32 [#allocation2], 4
      %s24 = int_to_ptr.vmem [resolvable:$true] %s23
      %29 = dma.hbm_to_vmem [thread:$0]  %s3, 512, %s24, [#allocation3], 128, 128, 8
    $region17: #{forward_model.1} parent=1 // pred_fallthru
      _
    // Predicated region
    $region18: #{forward_model.1} parent=1 // pred_check
      _
    $region19: #{forward_model.1} parent=1 // pred_check_branch
      %31 = sbr.rel (0) target = $region21
    $region20: #{forward_model.1} parent=1 // pred_region
      _
    $region21: #{forward_model.1} parent=1 // pred_fallthru
      _
    // Predicated region
    $region22: #{forward_model.1} parent=1 // pred_check
      _
    $region23: #{forward_model.1} parent=1 // pred_check_branch
      %33 = sbr.rel (0) target = $region25
    $region24: #{forward_model.1} parent=1 // pred_region
      %34 = dma.done [#allocation3], 512
    $region25: #{forward_model.1} parent=1 // pred_fallthru
      _
    %v35 = vld [vmem:[%s0] sm:$0xff]
    %v36 = vld [vmem:[%s2] sm:$0xf]
    %v37 = vld [vmem:[%s1] sm:$0xff]
    %v38 = vld [vmem:[#allocation2] sm:$0xff]
    %v39 = vld [vmem:[#allocation2 + $0x8] sm:$0xff]
    %v40 = vld [vmem:[#allocation2 + $0x10] sm:$0xff]
    %v41 = vld [vmem:[#allocation2 + $0x18] sm:$0xff]
    %vm42 = vcmask 261120
    %v44 = vsel %vm42, %v37, 0
    %46 = vmatprep.subr.mxu0 0.0
    %47 = vmatpush1.msra.mxu0 %v38
    %48 = vmatprep.subr.mxu0 0.0
    %49 = vmatpush1.msra.mxu0 %v39
    %50 = vmatprep.subr.mxu0 0.0
    %51 = vmatpush1.msra.mxu0 %v40
    %52 = vmatprep.subr.mxu0 0.0
    %53 = vmatpush1.msra.mxu0 %v41
    %54 = vmatprep.subr.mxu0 0.0
    %55 = vmatpush1.msra.mxu0 0.0
    %56 = vmatprep.subr.mxu0 0.0
    %57 = vmatpush1.msra.mxu0 0.0
    %58 = vmatprep.subr.mxu0 0.0
    %59 = vmatpush1.msra.mxu0 0.0
    %60 = vmatprep.subr.mxu0 0.0
    %61 = vmatpush1.msra.mxu0 0.0
    %62 = vmatprep.subr.mxu0 0.0
    %63 = vmatpush1.msra.mxu0 0.0
    %64 = vmatprep.subr.mxu0 0.0
    %65 = vmatpush1.msra.mxu0 0.0
    %66 = vmatprep.subr.mxu0 0.0
    %67 = vmatpush1.msra.mxu0 0.0
    %68 = vmatprep.subr.mxu0 0.0
    %69 = vmatpush1.msra.mxu0 0.0
    %70 = vmatprep.subr.mxu0 0.0
    %71 = vmatpush1.msra.mxu0 0.0
    %72 = vmatprep.subr.mxu0 0.0
    %73 = vmatpush1.msra.mxu0 0.0
    %74 = vmatprep.subr.mxu0 0.0
    %75 = vmatpush1.msra.mxu0 0.0
    %76 = vmatprep.subr.mxu0 0.0
    %77 = vmatpush1.msra.mxu0 0.0
    %78 = vmatprep.subr.mxu0 0.0
    %79 = vmatpush1.msra.mxu0 0.0
    %80 = vmatprep.subr.mxu0 0.0
    %81 = vmatpush1.msra.mxu0 0.0
    %82 = vmatprep.subr.mxu0 0.0
    %83 = vmatpush1.msra.mxu0 0.0
    %84 = vmatprep.subr.mxu0 0.0
    %85 = vmatpush1.msra.mxu0 0.0
    %86 = vmatprep.subr.mxu0 0.0
    %87 = vmatpush1.msra.mxu0 0.0
    %88 = vmatprep.subr.mxu0 0.0
    %89 = vmatpush1.msra.mxu0 0.0
    %90 = vmatprep.subr.mxu0 0.0
    %91 = vmatpush1.msra.mxu0 0.0
    %92 = vmatprep.subr.mxu0 0.0
    %93 = vmatpush1.msra.mxu0 0.0
    %94 = vmatprep.subr.mxu0 0.0
    %95 = vmatpush1.msra.mxu0 0.0
    %96 = vmatprep.subr.mxu0 0.0
    %97 = vmatpush1.msra.mxu0 0.0
    %98 = vmatprep.subr.mxu0 0.0
    %99 = vmatpush1.msra.mxu0 0.0
    %100 = vmatprep.subr.mxu0 0.0
    %101 = vmatpush1.msra.mxu0 0.0
    %102 = vmatprep.subr.mxu0 0.0
    %103 = vmatpush1.msra.mxu0 0.0
    %104 = vmatprep.subr.mxu0 0.0
    %105 = vmatpush1.msra.mxu0 0.0
    %106 = vmatprep.subr.mxu0 0.0
    %107 = vmatpush1.msra.mxu0 0.0
    %108 = vmatprep.subr.mxu0 0.0
    %109 = vmatpush1.msra.mxu0 0.0
    %110 = vmatprep.mubr.f32.mxu0 0.0
    %111 = vmatmul.mubr.f32.gmra.mrb[0].mxu0 %v44
    %v112 = vpop.f32.mrb[0].mxu0
    %v113 = vadd.f32 0.0, %v112
    %v114 = vpop.f32.mrb[0].mxu0
    %115 = vdwg.mxu0
    %vm116 = vcmask 31744
    %v118 = vsel %vm116, %v35, 0
    %vm120 = vcmask 1043456
    %v122 = vsel %vm120, %v36, 0
    %124 = vmatprep.subr.mxu0 0.0
    %125 = vmatpush1.msra.mxu0 %v122
    %126 = vmatprep.subr.mxu0 0.0
    %127 = vmatpush1.msra.mxu0 0.0
    %128 = vmatprep.subr.mxu0 0.0
    %129 = vmatpush1.msra.mxu0 0.0
    %130 = vmatprep.subr.mxu0 0.0
    %131 = vmatpush1.msra.mxu0 0.0
    %132 = vmatprep.subr.mxu0 0.0
    %133 = vmatpush1.msra.mxu0 0.0
    %134 = vmatprep.subr.mxu0 0.0
    %135 = vmatpush1.msra.mxu0 0.0
    %136 = vmatprep.subr.mxu0 0.0
    %137 = vmatpush1.msra.mxu0 0.0
    %138 = vmatprep.subr.mxu0 0.0
    %139 = vmatpush1.msra.mxu0 0.0
    %140 = vmatprep.subr.mxu0 0.0
    %141 = vmatpush1.msra.mxu0 0.0
    %142 = vmatprep.subr.mxu0 0.0
    %143 = vmatpush1.msra.mxu0 0.0
    %144 = vmatprep.subr.mxu0 0.0
    %145 = vmatpush1.msra.mxu0 0.0
    %146 = vmatprep.subr.mxu0 0.0
    %147 = vmatpush1.msra.mxu0 0.0
    %148 = vmatprep.subr.mxu0 0.0
    %149 = vmatpush1.msra.mxu0 0.0
    %150 = vmatprep.subr.mxu0 0.0
    %151 = vmatpush1.msra.mxu0 0.0
    %152 = vmatprep.subr.mxu0 0.0
    %153 = vmatpush1.msra.mxu0 0.0
    %154 = vmatprep.subr.mxu0 0.0
    %155 = vmatpush1.msra.mxu0 0.0
    %156 = vmatprep.subr.mxu0 0.0
    %157 = vmatpush1.msra.mxu0 0.0
    %158 = vmatprep.subr.mxu0 0.0
    %159 = vmatpush1.msra.mxu0 0.0
    %160 = vmatprep.subr.mxu0 0.0
    %161 = vmatpush1.msra.mxu0 0.0
    %162 = vmatprep.subr.mxu0 0.0
    %163 = vmatpush1.msra.mxu0 0.0
    %164 = vmatprep.subr.mxu0 0.0
    %165 = vmatpush1.msra.mxu0 0.0
    %166 = vmatprep.subr.mxu0 0.0
    %167 = vmatpush1.msra.mxu0 0.0
    %168 = vmatprep.subr.mxu0 0.0
    %169 = vmatpush1.msra.mxu0 0.0
    %170 = vmatprep.subr.mxu0 0.0
    %171 = vmatpush1.msra.mxu0 0.0
    %172 = vmatprep.subr.mxu0 0.0
    %173 = vmatpush1.msra.mxu0 0.0
    %174 = vmatprep.subr.mxu0 0.0
    %175 = vmatpush1.msra.mxu0 0.0
    %176 = vmatprep.subr.mxu0 0.0
    %177 = vmatpush1.msra.mxu0 0.0
    %178 = vmatprep.subr.mxu0 0.0
    %179 = vmatpush1.msra.mxu0 0.0
    %180 = vmatprep.subr.mxu0 0.0
    %181 = vmatpush1.msra.mxu0 0.0
    %182 = vmatprep.subr.mxu0 0.0
    %183 = vmatpush1.msra.mxu0 0.0
    %184 = vmatprep.subr.mxu0 0.0
    %185 = vmatpush1.msra.mxu0 0.0
    %186 = vmatprep.subr.mxu0 0.0
    %187 = vmatpush1.msra.mxu0 0.0
    %188 = vmatprep.mubr.f32.mxu0 0.0
    %189 = vmatmul.mubr.f32.gmra.mrb[0].mxu0 %v118
    %v190 = vpop.f32.mrb[0].mxu0
    %v191 = vadd.f32 %v113, %v190
    %v192 = vpop.f32.mrb[0].mxu0
    %193 = vdwg.mxu0
    %v194 = vld [vmem:[%s4] sm:$0x1]
    %v196 = vlaneseq
    %v197 = vshrl.u32 %v196, 7
    %v198 = vsub.s32 0, %v197
    %v199 = vrot.slane %v194, %v198
    %v201 = vadd.f32 %v191, %v199
    %202 = vst.msk [vmem:[#allocation5] sm:$0xff] %vm42, %v201
    // Predicated region
    $region26: #{forward_model.1} parent=1 // pred_check
      _
    $region27: #{forward_model.1} parent=1 // pred_check_branch
      %204 = sbr.rel (0) target = $region29
    $region28: #{forward_model.1} parent=1 // pred_region
      %s206 = ssub.s32 128, 128
      %207 = vsyncadd [#allocation4], %s206
      %s209 = sshll.u32 [#allocation5], 4
      %s210 = int_to_ptr.vmem [resolvable:$true] %s209
      %212 = dma.vmem_to_hbm [thread:$0]  %s210, 128, %s5, [#allocation4]
    $region29: #{forward_model.1} parent=1 // pred_fallthru
      _
    // Predicated region
    $region30: #{forward_model.1} parent=1 // pred_check
      _
    $region31: #{forward_model.1} parent=1 // pred_check_branch
      %214 = sbr.rel (0) target = $region33
    $region32: #{forward_model.1} parent=1 // pred_region
      %215 = dma.done [#allocation4], 128
    $region33: #{forward_model.1} parent=1 // pred_fallthru
      _
    %216 = vsyncpa [#allocation3], 1
    %217 = vsyncpa [#allocation4], 1

</llo_original>
